<compile_context>
chip_gen: v7x
topology: tpu7x:2x2x1
jax: 0.10.0
libtpu: 0.0.40
codegen_flags: <defaults>
</compile_context>

<pallas_src>
import functools

import jax
import jax.numpy as jnp
from jax import lax
from jax.experimental import pallas as pl
from jax.experimental.pallas import tpu as pltpu

LANES = 128
TILE_ROWS = 2048   # (2048, 128) f32 block = 1 MiB; safe for v5e/v6e/v7x VMEM budgets

# Giles (2010) single-precision erfinv coefficients (central / tail branches).
_ERFINV_CENTRAL = (
    2.81022636e-08, 3.43273939e-07, -3.5233877e-06, -4.39150654e-06,
    0.00021858087, -0.00125372503, -0.00417768164, 0.246640727, 1.50140941,
)
_ERFINV_TAIL = (
    -0.000200214257, 0.000100950558, 0.00134934322, -0.00367342844,
    0.00573950773, -0.0076224613, 0.00943887047, 1.00167406, 2.83297682,
)


def _erfinv_f32(t):
    """erfinv(t), t in (-1, 1), float32; trig-free (mul/add/log/sqrt/select)."""
    w = -jnp.log((1.0 - t) * (1.0 + t))
    # Central branch (w < 5): covers the vast majority of samples.
    wc = w - 2.5
    pc = jnp.float32(_ERFINV_CENTRAL[0])
    for c in _ERFINV_CENTRAL[1:]:
        pc = jnp.float32(c) + pc * wc
    # Tail branch.
    wt = jnp.sqrt(w) - 3.0
    pt = jnp.float32(_ERFINV_TAIL[0])
    for c in _ERFINV_TAIL[1:]:
        pt = jnp.float32(c) + pt * wt
    return jnp.where(w < 5.0, pc, pt) * t


def _gaussian_noise_kernel(x_ref, bits_ref, o_ref, *, sigma):
    # Uniform in [0, 1): stuff the top 23 random bits into a float32 mantissa.
    bits = bits_ref[...]
    fbits = (bits >> 9) | jnp.uint32(0x3F800000)               # float bits in [1, 2)
    u = lax.bitcast_convert_type(fbits, jnp.float32) - 1.0     # uniform [0, 1)
    # Map to (-1, 1), kept away from the endpoints so log() stays finite.
    t = 2.0 * u - 1.0
    t = jnp.maximum(jnp.minimum(t, jnp.float32(0.9999999)), jnp.float32(-0.9999999))
    z = jnp.float32(1.4142135381698608) * _erfinv_f32(t)       # sqrt(2)*erfinv ~ N(0,1)
    # out = x * (1 + sigma * z): compute in f32, single cast at the store.
    xf = x_ref[...].astype(jnp.float32)
    o_ref[...] = (xf * (1.0 + jnp.float32(sigma) * z)).astype(o_ref.dtype)


@functools.partial(jax.jit, static_argnames=("sigma", "is_relative_detach", "training"))
def gaussian_noise(x, seed, *, sigma=0.1, is_relative_detach=True, training=True):
    """Pallas implementation of GaussianNoise.forward (any shape, e.g. NCHW)."""
    del is_relative_detach  # affects autograd only; forward value is identical
    if not training or sigma == 0:
        return x

    orig_shape = x.shape
    total = x.size

    # Lane-dense (rows, 128) view. Pad only when the flat size is not a
    # multiple of 128 (tiny, and absent for typical NN shapes).
    flat = x.reshape(-1)
    pad = (-total) % LANES
    if pad:
        flat = jnp.pad(flat, (0, pad))
    rows = flat.shape[0] // LANES
    x2d = flat.reshape(rows, LANES)

    # Counter-based random words: unique per element -> no per-block reseeding.
    bits = jax.random.bits(jax.random.PRNGKey(seed), (rows, LANES), dtype=jnp.uint32)

    tile_rows = min(TILE_ROWS, rows)          # full dim if small; multiple of 8 otherwise
    grid = (pl.cdiv(rows, tile_rows),)

    out2d = pl.pallas_call(
        functools.partial(_gaussian_noise_kernel, sigma=float(sigma)),
        out_shape=jax.ShapeDtypeStruct((rows, LANES), x.dtype),
        grid=grid,
        in_specs=[
            pl.BlockSpec((tile_rows, LANES), lambda i: (i, 0)),   # x tile
            pl.BlockSpec((tile_rows, LANES), lambda i: (i, 0)),   # random-bits tile
        ],
        out_specs=pl.BlockSpec((tile_rows, LANES), lambda i: (i, 0)),
        compiler_params=pltpu.CompilerParams(
            dimension_semantics=("parallel",),        # shards across v7x's 2 TCs
            vmem_limit_bytes=32 * 1024 * 1024,
        ),
    )(x2d, bits)

    out = out2d.reshape(-1)
    if pad:
        out = out[:total]
    return out.reshape(orig_shape)


if __name__ == "__main__":
    key = jax.random.PRNGKey(0)
    # NCHW input: batch=2, channels=4, spatial=16x16
    x = jax.random.normal(key, (2, 4, 16, 16), dtype=jnp.float32)

    y = jax.block_until_ready(gaussian_noise(x, 0, sigma=0.1, training=True))

    # Shape/dtype preserved, values finite, and noise is relative to |x|.
    assert y.shape == x.shape and y.dtype == x.dtype
    assert bool(jnp.all(jnp.isfinite(y)))
    assert bool(jnp.all(jnp.abs(y - x) <= 0.7 * jnp.abs(x) + 1e-5))
    assert float(jnp.max(jnp.abs(y - x))) > 0.0

    # Rough distribution check on the implied z = (y/x - 1)/sigma.
    mask = jnp.abs(x) > 1e-3
    safe_x = jnp.where(mask, x, 1.0)
    z_est = jnp.where(mask, (y - x) / (0.1 * safe_x), 0.0)
    n = jnp.sum(mask)
    mean = jnp.sum(z_est) / n
    std = jnp.sqrt(jnp.sum(jnp.where(mask, (z_est - mean) ** 2, 0.0)) / n)
    assert abs(float(mean)) < 0.15 and 0.8 < float(std) < 1.2

    # Eval mode / sigma == 0 is the identity.
    y_eval = jax.block_until_ready(gaussian_noise(x, 0, sigma=0.1, training=False))
    assert bool(jnp.all(y_eval == x))
    y_zero = jax.block_until_ready(gaussian_noise(x, 0, sigma=0.0, training=True))
    assert bool(jnp.all(y_zero == x))

    print("KERNEL_OK")
</pallas_src>

<mosaic_0001>
module attributes {stable_mosaic.version = 11 : i64} {
  func.func @_gaussian_noise_kernel(%arg0: i32, %arg1: memref<16x128xf32, #tpu.memory_space<vmem>>, %arg2: memref<16x128xi32, #tpu.memory_space<vmem>>, %arg3: memref<16x128xf32, #tpu.memory_space<vmem>>) attributes {dimension_semantics = [#tpu.dimension_semantics<parallel>], iteration_bounds = array<i64: 1>, scalar_prefetch = 0 : i64, scratch_operands = 0 : i64, tpu.core_type = #tpu.core_type<tc>, window_params = [{transform_indices = @transform_0, window_bounds = array<i64: 16, 128>}, {transform_indices = @transform_1, window_bounds = array<i64: 16, 128>}, {transform_indices = @transform_2, window_bounds = array<i64: 16, 128>}]} {
    %c0 = arith.constant 0 : index
    %c0_0 = arith.constant 0 : index
    %0 = vector.load %arg2[%c0, %c0_0] : memref<16x128xi32, #tpu.memory_space<vmem>>, vector<16x128xi32>
    %c9_i32 = arith.constant 9 : i32
    %1 = vector.broadcast %c9_i32 : i32 to vector<16x128xi32>
    %2 = arith.shrui %0, %1 : vector<16x128xi32>
    %c1065353216_i32 = arith.constant 1065353216 : i32
    %3 = vector.broadcast %c1065353216_i32 : i32 to vector<16x128xi32>
    %4 = arith.ori %2, %3 : vector<16x128xi32>
    %5 = tpu.bitcast %4 : vector<16x128xi32> -> vector<16x128xf32>
    %cst = arith.constant 1.000000e+00 : f32
    %6 = vector.broadcast %cst : f32 to vector<16x128xf32>
    %7 = arith.subf %5, %6 : vector<16x128xf32>
    %cst_1 = arith.constant 2.000000e+00 : f32
    %8 = vector.broadcast %cst_1 : f32 to vector<16x128xf32>
    %9 = arith.mulf %8, %7 : vector<16x128xf32>
    %cst_2 = arith.constant 1.000000e+00 : f32
    %10 = vector.broadcast %cst_2 : f32 to vector<16x128xf32>
    %11 = arith.subf %9, %10 : vector<16x128xf32>
    %cst_3 = arith.constant 0.99999988 : f32
    %12 = vector.broadcast %cst_3 : f32 to vector<16x128xf32>
    %13 = arith.minimumf %11, %12 : vector<16x128xf32>
    %cst_4 = arith.constant -0.99999988 : f32
    %14 = vector.broadcast %cst_4 : f32 to vector<16x128xf32>
    %15 = arith.maximumf %13, %14 : vector<16x128xf32>
    %cst_5 = arith.constant 1.000000e+00 : f32
    %16 = vector.broadcast %cst_5 : f32 to vector<16x128xf32>
    %17 = arith.subf %16, %15 : vector<16x128xf32>
    %cst_6 = arith.constant 1.000000e+00 : f32
    %18 = vector.broadcast %cst_6 : f32 to vector<16x128xf32>
    %19 = arith.addf %18, %15 : vector<16x128xf32>
    %20 = arith.mulf %17, %19 : vector<16x128xf32>
    %21 = math.log %20 : vector<16x128xf32>
    %cst_7 = arith.constant 0.000000e+00 : f32
    %22 = vector.broadcast %cst_7 : f32 to vector<16x128xf32>
    %23 = arith.subf %22, %21 : vector<16x128xf32>
    %cst_8 = arith.constant 2.500000e+00 : f32
    %24 = vector.broadcast %cst_8 : f32 to vector<16x128xf32>
    %25 = arith.subf %23, %24 : vector<16x128xf32>
    %cst_9 = arith.constant 2.81022636E-8 : f32
    %26 = vector.broadcast %cst_9 : f32 to vector<16x128xf32>
    %27 = arith.mulf %26, %25 : vector<16x128xf32>
    %cst_10 = arith.constant 3.43273939E-7 : f32
    %28 = vector.broadcast %cst_10 : f32 to vector<16x128xf32>
    %29 = arith.addf %28, %27 : vector<16x128xf32>
    %30 = arith.mulf %29, %25 : vector<16x128xf32>
    %cst_11 = arith.constant -3.5233877E-6 : f32
    %31 = vector.broadcast %cst_11 : f32 to vector<16x128xf32>
    %32 = arith.addf %31, %30 : vector<16x128xf32>
    %33 = arith.mulf %32, %25 : vector<16x128xf32>
    %cst_12 = arith.constant -4.39150654E-6 : f32
    %34 = vector.broadcast %cst_12 : f32 to vector<16x128xf32>
    %35 = arith.addf %34, %33 : vector<16x128xf32>
    %36 = arith.mulf %35, %25 : vector<16x128xf32>
    %cst_13 = arith.constant 2.1858087E-4 : f32
    %37 = vector.broadcast %cst_13 : f32 to vector<16x128xf32>
    %38 = arith.addf %37, %36 : vector<16x128xf32>
    %39 = arith.mulf %38, %25 : vector<16x128xf32>
    %cst_14 = arith.constant -0.00125372503 : f32
    %40 = vector.broadcast %cst_14 : f32 to vector<16x128xf32>
    %41 = arith.addf %40, %39 : vector<16x128xf32>
    %42 = arith.mulf %41, %25 : vector<16x128xf32>
    %cst_15 = arith.constant -0.00417768164 : f32
    %43 = vector.broadcast %cst_15 : f32 to vector<16x128xf32>
    %44 = arith.addf %43, %42 : vector<16x128xf32>
    %45 = arith.mulf %44, %25 : vector<16x128xf32>
    %cst_16 = arith.constant 0.246640727 : f32
    %46 = vector.broadcast %cst_16 : f32 to vector<16x128xf32>
    %47 = arith.addf %46, %45 : vector<16x128xf32>
    %48 = arith.mulf %47, %25 : vector<16x128xf32>
    %cst_17 = arith.constant 1.50140941 : f32
    %49 = vector.broadcast %cst_17 : f32 to vector<16x128xf32>
    %50 = arith.addf %49, %48 : vector<16x128xf32>
    %51 = math.sqrt %23 : vector<16x128xf32>
    %cst_18 = arith.constant 3.000000e+00 : f32
    %52 = vector.broadcast %cst_18 : f32 to vector<16x128xf32>
    %53 = arith.subf %51, %52 : vector<16x128xf32>
    %cst_19 = arith.constant -2.00214257E-4 : f32
    %54 = vector.broadcast %cst_19 : f32 to vector<16x128xf32>
    %55 = arith.mulf %54, %53 : vector<16x128xf32>
    %cst_20 = arith.constant 1.00950558E-4 : f32
    %56 = vector.broadcast %cst_20 : f32 to vector<16x128xf32>
    %57 = arith.addf %56, %55 : vector<16x128xf32>
    %58 = arith.mulf %57, %53 : vector<16x128xf32>
    %cst_21 = arith.constant 0.00134934322 : f32
    %59 = vector.broadcast %cst_21 : f32 to vector<16x128xf32>
    %60 = arith.addf %59, %58 : vector<16x128xf32>
    %61 = arith.mulf %60, %53 : vector<16x128xf32>
    %cst_22 = arith.constant -0.00367342844 : f32
    %62 = vector.broadcast %cst_22 : f32 to vector<16x128xf32>
    %63 = arith.addf %62, %61 : vector<16x128xf32>
    %64 = arith.mulf %63, %53 : vector<16x128xf32>
    %cst_23 = arith.constant 0.00573950773 : f32
    %65 = vector.broadcast %cst_23 : f32 to vector<16x128xf32>
    %66 = arith.addf %65, %64 : vector<16x128xf32>
    %67 = arith.mulf %66, %53 : vector<16x128xf32>
    %cst_24 = arith.constant -0.0076224613 : f32
    %68 = vector.broadcast %cst_24 : f32 to vector<16x128xf32>
    %69 = arith.addf %68, %67 : vector<16x128xf32>
    %70 = arith.mulf %69, %53 : vector<16x128xf32>
    %cst_25 = arith.constant 0.00943887047 : f32
    %71 = vector.broadcast %cst_25 : f32 to vector<16x128xf32>
    %72 = arith.addf %71, %70 : vector<16x128xf32>
    %73 = arith.mulf %72, %53 : vector<16x128xf32>
    %cst_26 = arith.constant 1.00167406 : f32
    %74 = vector.broadcast %cst_26 : f32 to vector<16x128xf32>
    %75 = arith.addf %74, %73 : vector<16x128xf32>
    %76 = arith.mulf %75, %53 : vector<16x128xf32>
    %cst_27 = arith.constant 2.83297682 : f32
    %77 = vector.broadcast %cst_27 : f32 to vector<16x128xf32>
    %78 = arith.addf %77, %76 : vector<16x128xf32>
    %cst_28 = arith.constant 5.000000e+00 : f32
    %79 = vector.broadcast %cst_28 : f32 to vector<16x128xf32>
    %80 = arith.cmpf olt, %23, %79 : vector<16x128xf32>
    %81 = arith.select %80, %50, %78 : vector<16x128xi1>, vector<16x128xf32>
    %82 = arith.mulf %81, %15 : vector<16x128xf32>
    %cst_29 = arith.constant 1.41421354 : f32
    %83 = vector.broadcast %cst_29 : f32 to vector<16x128xf32>
    %84 = arith.mulf %83, %82 : vector<16x128xf32>
    %c0_30 = arith.constant 0 : index
    %c0_31 = arith.constant 0 : index
    %85 = vector.load %arg1[%c0_30, %c0_31] : memref<16x128xf32, #tpu.memory_space<vmem>>, vector<16x128xf32>
    %cst_32 = arith.constant 1.000000e-01 : f32
    %86 = vector.broadcast %cst_32 : f32 to vector<16x128xf32>
    %87 = arith.mulf %86, %84 : vector<16x128xf32>
    %cst_33 = arith.constant 1.000000e+00 : f32
    %88 = vector.broadcast %cst_33 : f32 to vector<16x128xf32>
    %89 = arith.addf %88, %87 : vector<16x128xf32>
    %90 = arith.mulf %85, %89 : vector<16x128xf32>
    %c0_34 = arith.constant 0 : index
    %c0_35 = arith.constant 0 : index
    %91 = vector.load %arg3[%c0_34, %c0_35] : memref<16x128xf32, #tpu.memory_space<vmem>>, vector<16x128xf32>
    tpu.vector_store %arg3[%c0_34, %c0_35], %90 {strides = array<i32>} : memref<16x128xf32, #tpu.memory_space<vmem>>, vector<16x128xf32>,
    return
  }
  func.func @transform_0(%arg0: i32) -> (i32, i32) {
    %c0_i32 = arith.constant 0 : i32
    %c0_i32_0 = arith.constant 0 : i32
    return %arg0, %c0_i32 : i32, i32
  }
  func.func @transform_1(%arg0: i32) -> (i32, i32) {
    %c0_i32 = arith.constant 0 : i32
    %c0_i32_0 = arith.constant 0 : i32
    return %arg0, %c0_i32 : i32, i32
  }
  func.func @transform_2(%arg0: i32) -> (i32, i32) {
    %c0_i32 = arith.constant 0 : i32
    %c0_i32_0 = arith.constant 0 : i32
    return %arg0, %c0_i32 : i32, i32
  }
}

</mosaic_0001>

<llo_original>
// kernel: gaussian_noise.1
$region0: #{gaussian_noise.1}
  #allocation0 [shape = 'u32[]', space=smem, size = 0x4, offset = 0x4, fixed_abs, tag = 'smem constant byte address 0x4 - core index']
  #allocation1 [shape = 'u32[144,128]{1,0:T(1,128)}', space=vmem, size = 0x12000, scoped, tag = 'internal scratch']
  %s0 = inlined_call_operand.vmem [shape: f32[16,128], index: 0, kind: input, shape index: {}]
  %s1 = inlined_call_operand.vmem [shape: u32[16,128], index: 1, kind: input, shape index: {}]
  %s2 = inlined_call_operand.vmem [shape: f32[16,128], index: 2, kind: output, shape index: {}]
  %s3 = sld [smem:[#allocation0]]
  $region18: #{gaussian_noise.1} parent=0
    _
  %s5 = ssub.s32 1, %s3
  %s6 = scalar_select 0, %s5, %s3
  // Predicated region
  $region2: #{gaussian_noise.1} parent=0 // pred_check
    _
  $region3: #{gaussian_noise.1} parent=0 // pred_check_branch
    %8 = sbr.rel (0) target = $region5
  $region4: #{gaussian_noise.1} parent=0 // pred_region
    _
  $region5: #{gaussian_noise.1} parent=0 // pred_fallthru
    _
  // Predicated region
  $region6: #{gaussian_noise.1} parent=0 // pred_check
    _
  $region7: #{gaussian_noise.1} parent=0 // pred_check_branch
    %10 = sbr.rel (0) target = $region9
  $region8: #{gaussian_noise.1} parent=0 // pred_region
    _
  $region9: #{gaussian_noise.1} parent=0 // pred_fallthru
    _
  %v11 = vld [vmem:[%s1] sm:$0xff]
  %v12 = vld [vmem:[%s1 + $0x8] sm:$0xff]
  %v13 = vshrl.u32 %v11, 9
  %v14 = vshrl.u32 %v12, 9
  %v15 = vor.u32 %v13, 1065353216
  %v16 = vor.u32 %v14, 1065353216
  %v19 = vsub.f32 %v15, 1.0
  %v20 = vsub.f32 %v16, 1.0
  %v21 = vmul.f32 %v19, 2.0
  %v22 = vmul.f32 %v20, 2.0
  %v23 = vsub.f32 %v21, 1.0
  %v24 = vsub.f32 %v22, 1.0
  %v25 = vmin.f32 %v23, 0.9999999
  %v26 = vmin.f32 %v24, 0.9999999
  %v27 = vmax.f32 %v25, -0.9999999
  %v28 = vmax.f32 %v26, -0.9999999
  %v29 = vsub.f32 1.0, %v27
  %v30 = vsub.f32 1.0, %v28
  %v31 = vadd.f32 %v27, 1.0
  %v32 = vadd.f32 %v28, 1.0
  %v33 = vmul.f32 %v29, %v31
  %v34 = vmul.f32 %v30, %v32
  %v35 = vlog2.pop %v33
  %v36 = vmul.f32 %v35, 0.6931472
  %v37 = vlog2.pop %v34
  %v38 = vmul.f32 %v37, 0.6931472
  %v39 = vsub.f32 0.0, %v36
  %v40 = vsub.f32 0.0, %v38
  %v41 = vsub.f32 %v39, 2.5
  %v42 = vsub.f32 %v40, 2.5
  %v43 = vmul.f32 %v41, 2.8102264e-08
  %v44 = vmul.f32 %v42, 2.8102264e-08
  %v45 = vadd.f32 %v43, 3.4327394e-07
  %v46 = vadd.f32 %v44, 3.4327394e-07
  %v47 = vmul.f32 %v45, %v41
  %v48 = vmul.f32 %v46, %v42
  %v49 = vadd.f32 %v47, -3.5233877e-06
  %v50 = vadd.f32 %v48, -3.5233877e-06
  %v51 = vmul.f32 %v49, %v41
  %v52 = vmul.f32 %v50, %v42
  %v53 = vadd.f32 %v51, -4.3915065e-06
  %v54 = vadd.f32 %v52, -4.3915065e-06
  %v55 = vmul.f32 %v53, %v41
  %v56 = vmul.f32 %v54, %v42
  %v57 = vadd.f32 %v55, 0.00021858087
  %v58 = vadd.f32 %v56, 0.00021858087
  %v59 = vmul.f32 %v57, %v41
  %v60 = vmul.f32 %v58, %v42
  %v61 = vadd.f32 %v59, -0.001253725
  %v62 = vadd.f32 %v60, -0.001253725
  %v63 = vmul.f32 %v61, %v41
  %v64 = vmul.f32 %v62, %v42
  %v65 = vadd.f32 %v63, -0.0041776816
  %v66 = vadd.f32 %v64, -0.0041776816
  %v67 = vmul.f32 %v65, %v41
  %v68 = vmul.f32 %v66, %v42
  %v69 = vadd.f32 %v67, 0.24664073
  %v70 = vadd.f32 %v68, 0.24664073
  %v71 = vmul.f32 %v69, %v41
  %v72 = vmul.f32 %v70, %v42
  %v73 = vadd.f32 %v71, 1.5014094
  %v74 = vadd.f32 %v72, 1.5014094
  %v75 = vrsqrt.pop %v39
  %v76 = vmul.f32 %v39, %v75
  %vm77 = vcmp.eq.f32.partialorder %v39, inf
  %v78 = vsel %vm77, %v39, %v76
  %vm79 = vcmp.eq.f32.partialorder %v39, 0.0
  %v80 = vand.u32 %v39, 2147483648
  %v81 = vsel %vm79, %v80, %v78
  %v82 = vrsqrt.pop %v40
  %v83 = vmul.f32 %v40, %v82
  %vm84 = vcmp.eq.f32.partialorder %v40, inf
  %v85 = vsel %vm84, %v40, %v83
  %vm86 = vcmp.eq.f32.partialorder %v40, 0.0
  %v87 = vand.u32 %v40, 2147483648
  %v88 = vsel %vm86, %v87, %v85
  %v89 = vsub.f32 %v81, 3.0
  %v90 = vsub.f32 %v88, 3.0
  %v91 = vmul.f32 %v89, -0.00020021426
  %v92 = vmul.f32 %v90, -0.00020021426
  %v93 = vadd.f32 %v91, 0.00010095056
  %v94 = vadd.f32 %v92, 0.00010095056
  %v95 = vmul.f32 %v93, %v89
  %v96 = vmul.f32 %v94, %v90
  %v97 = vadd.f32 %v95, 0.0013493432
  %v98 = vadd.f32 %v96, 0.0013493432
  %v99 = vmul.f32 %v97, %v89
  %v100 = vmul.f32 %v98, %v90
  %v101 = vadd.f32 %v99, -0.0036734284
  %v102 = vadd.f32 %v100, -0.0036734284
  %v103 = vmul.f32 %v101, %v89
  %v104 = vmul.f32 %v102, %v90
  %v105 = vadd.f32 %v103, 0.0057395077
  %v106 = vadd.f32 %v104, 0.0057395077
  %v107 = vmul.f32 %v105, %v89
  %v108 = vmul.f32 %v106, %v90
  %v109 = vadd.f32 %v107, -0.0076224613
  %v110 = vadd.f32 %v108, -0.0076224613
  %v111 = vmul.f32 %v109, %v89
  %v112 = vmul.f32 %v110, %v90
  %v113 = vadd.f32 %v111, 0.0094388705
  %v114 = vadd.f32 %v112, 0.0094388705
  %v115 = vmul.f32 %v113, %v89
  %v116 = vmul.f32 %v114, %v90
  %v117 = vadd.f32 %v115, 1.001674
  %v118 = vadd.f32 %v116, 1.001674
  %v119 = vmul.f32 %v117, %v89
  %v120 = vmul.f32 %v118, %v90
  %v121 = vadd.f32 %v119, 2.8329768
  %v122 = vadd.f32 %v120, 2.8329768
  %vm123 = vcmp.lt.f32.partialorder %v39, 5.0
  %vm124 = vcmp.lt.f32.partialorder %v40, 5.0
  %v125 = vsel %vm123, %v73, %v121
  %v126 = vsel %vm124, %v74, %v122
  %v127 = vmul.f32 %v125, %v27
  %v128 = vmul.f32 %v126, %v28
  %v129 = vmul.f32 %v127, 1.4142135
  %v130 = vmul.f32 %v128, 1.4142135
  %v131 = vld [vmem:[%s0] sm:$0xff]
  %v132 = vld [vmem:[%s0 + $0x8] sm:$0xff]
  %v133 = vmul.f32 %v129, 0.1
  %v134 = vmul.f32 %v130, 0.1
  %v135 = vadd.f32 %v133, 1.0
  %v136 = vadd.f32 %v134, 1.0
  %v137 = vmul.f32 %v131, %v135
  %v138 = vmul.f32 %v132, %v136
  %139 = vst [vmem:[%s2] sm:$0xff] %v137
  %140 = vst [vmem:[%s2 + $0x8] sm:$0xff] %v138
  // Predicated region
  $region10: #{gaussian_noise.1} parent=0 // pred_check
    _
  $region11: #{gaussian_noise.1} parent=0 // pred_check_branch
    %142 = sbr.rel (0) target = $region13
  $region12: #{gaussian_noise.1} parent=0 // pred_region
    _
  $region13: #{gaussian_noise.1} parent=0 // pred_fallthru
    _
  // Predicated region
  $region14: #{gaussian_noise.1} parent=0 // pred_check
    _
  $region15: #{gaussian_noise.1} parent=0 // pred_check_branch
    %144 = sbr.rel (0) target = $region17
  $region16: #{gaussian_noise.1} parent=0 // pred_region
    _
  $region17: #{gaussian_noise.1} parent=0 // pred_fallthru
    _

</llo_original>
